<compile_context>
chip_gen: v7x
topology: tpu7x:2x2x1
jax: 0.10.0
libtpu: 0.0.40
codegen_flags: <defaults>
</compile_context>

<pallas_src>
import functools
import math

import jax
import jax.numpy as jnp
from jax import lax
from jax.experimental import pallas as pl
from jax.experimental.pallas import tpu as pltpu


def _causal_conv2d_kernel(x_ref, w_ref, y_ref, rhs_ref, *,
                          KH, KW, Wd, HW, C_in, b_tile):
    """One batch tile (b_tile images) per grid step.

    x_ref  : (b_tile, C_in, HW+pad)    zero-tailed flat images (padded wrapper-side)
    w_ref  : (C_out, KH*KW*C_in + KH)  flattened per-tap weights + bias columns
    y_ref  : (b_tile, C_out, HW)       output in padded-W layout (wrapper slices)
    rhs_ref: (KH*KW*C_in + KH, HW)     im2col scratch: stacked taps + causal mask rows
    """
    nk_img = KH * KW * C_in

    # Causal bias rows: rhs[nk_img + i, h*W + w] = 1.0 iff h + i < H.
    # Rebuilt every step (cheap: KH rows) rather than pl.when(program_id==0),
    # because scratch is per-core under megacore sharding of the parallel grid
    # axis and core 1 would otherwise never see the init.
    lane = lax.broadcasted_iota(jnp.int32, (KH, HW), 1)
    row_i = lax.broadcasted_iota(jnp.int32, (KH, HW), 0)
    rhs_ref[nk_img:nk_img + KH, :] = (lane < (HW - row_i * Wd)).astype(rhs_ref.dtype)

    for b in range(b_tile):                       # static unroll, b_tile is small
        # im2col build: flat lane offset i*W + kw selects tap (i, kw); reads
        # past row H-1 land in the wrapper-provided zero tail (no masking).
        # TODO(synk): at production sizes, pad each image row to a multiple of
        # 128 lanes so the KH row shifts are vreg-aligned and only KW distinct
        # lane rotates remain (pltpu.roll), and add an H-tile grid axis with a
        # (KH-1)-row halo so tiles stay bounded against v7x's 64 MiB VMEM.
        for i in range(KH):
            for kw in range(KW):
                t = i * KW + kw
                off = i * Wd + kw
                rhs_ref[t * C_in:(t + 1) * C_in, :] = x_ref[b, :, off:off + HW]
        # One fused MXU matmul: channels, taps and causal bias all contract at once.
        y_ref[b] = jnp.dot(w_ref[...], rhs_ref[...],
                           preferred_element_type=jnp.float32).astype(y_ref.dtype)


@functools.partial(jax.jit, static_argnames=("compute_dtype", "b_tile"))
def causal_conv2d(x, W_stack, b_stack, *, compute_dtype=jnp.float32, b_tile=None):
    """x: (B, C_in, H, W); W_stack: (KH, C_out, C_in, KW); b_stack: (KH, C_out).

    compute_dtype=jnp.bfloat16 halves input-side HBM/VMEM traffic on v6e/v7x
    (MXU is bf16-native; accumulation stays f32).  Keep f32 on v5e unless the
    cast cost is amortized.
    """
    B, C_in, H, Wd = x.shape
    KH, C_out, _, KW = W_stack.shape
    W_out = Wd - KW + 1
    HW = H * Wd
    nk_img = KH * KW * C_in
    K_total = nk_img + KH                      # + KH causal-bias rows/columns

    # Batch tile: amortize per-step overhead but keep >= 2 grid steps (megacore).
    if b_tile is None:
        cap = max(1, min(8, B // 2)) if B > 1 else 1
        b_tile = 1
        for d in range(cap, 0, -1):
            if B % d == 0:
                b_tile = d
                break
    assert B % b_tile == 0

    # ---- wrapper-side layout plumbing only (no compute hoisting) ------------
    # One-time flat pad of x in HBM: the zero tail absorbs every tap that falls
    # below the bottom row, so the kernel needs no per-step VMEM->VMEM copy and
    # no masking.  Rounded to a lane multiple to stay vreg-aligned.
    max_shift = (KH - 1) * Wd + (KW - 1)
    pad = ((max_shift + 127) // 128) * 128 if max_shift > 0 else 0
    HWp = HW + pad
    x_pad = jnp.pad(x.astype(compute_dtype).reshape(B, C_in, HW),
                    ((0, 0), (0, 0), (0, pad)))

    # Fused weight matrix: per-tap weights flattened to (C_out, KH*KW*C_in) with
    # layout [o, (i*KW+kw)*C_in + c], plus the KH per-layer biases appended as
    # extra columns (they contract against the causal-mask rows of the RHS).
    w_taps = jnp.transpose(W_stack.astype(compute_dtype), (1, 0, 3, 2))
    w_taps = w_taps.reshape(C_out, nk_img)
    w_mat = jnp.concatenate([w_taps, b_stack.astype(compute_dtype).T], axis=1)

    kernel = functools.partial(_causal_conv2d_kernel, KH=KH, KW=KW, Wd=Wd,
                               HW=HW, C_in=C_in, b_tile=b_tile)

    itemsize = jnp.dtype(compute_dtype).itemsize
    step_bytes = (2 * b_tile * C_in * HWp * itemsize          # x tile, double-buffered
                  + 2 * b_tile * C_out * HW * 4               # y tile, double-buffered
                  + 2 * C_out * K_total * itemsize            # fused weights (tiny)
                  + ((K_total + 7) // 8) * 8 * HW * itemsize) # im2col scratch
    # Explicit VMEM budget; stays well under v7x's 64 MiB physical VMEM.
    vmem_limit = int(min(max(2 * step_bytes, 32 * 1024 * 1024), 48 * 1024 * 1024))

    cost = pl.CostEstimate(
        flops=2 * B * C_out * HW * K_total,
        transcendentals=0,
        bytes_accessed=(B * C_in * HWp * itemsize
                        + C_out * K_total * itemsize
                        + B * C_out * HW * 4))

    y_flat = pl.pallas_call(
        kernel,
        out_shape=jax.ShapeDtypeStruct((B, C_out, HW), jnp.float32),
        grid=(B // b_tile,),
        in_specs=[
            pl.BlockSpec((b_tile, C_in, HWp), lambda g: (g, 0, 0)),   # images
            pl.BlockSpec((C_out, K_total), lambda g: (0, 0)),         # fused W+bias
        ],
        out_specs=pl.BlockSpec((b_tile, C_out, HW), lambda g: (g, 0, 0)),
        scratch_shapes=[pltpu.VMEM((K_total, HW), compute_dtype)],
        compiler_params=pltpu.CompilerParams(
            dimension_semantics=("parallel",),
            vmem_limit_bytes=vmem_limit),
        cost_estimate=cost,
    )(x_pad, w_mat)

    # Columns w >= W_out of the padded output are wrap-around garbage and must
    # never be consumed; slice them off here.  If downstream ops can take the
    # lane-dense padded-W layout instead, skip this slice to save an extra
    # HBM->HBM copy of the whole output.
    return y_flat.reshape(B, C_out, H, Wd)[:, :, :, :W_out]


def _reference(x, W_stack, b_stack):
    """Pure-JAX transcription of the PyTorch CausalConv2d.forward (NCHW)."""
    KH, C_out, C_in, KW = W_stack.shape
    B, _, H, Wd = x.shape
    W_out = Wd - KW + 1

    def conv_1xk(w, b):
        acc = jnp.zeros((B, C_out, H, W_out), jnp.float32)
        for kw in range(KW):
            acc = acc + jnp.einsum("bchw,oc->bohw", x[:, :, :, kw:kw + W_out], w[:, :, kw])
        return acc + b[None, :, None, None]

    y = conv_1xk(W_stack[0], b_stack[0])          # dilation 0: pad/slice are no-ops
    for i in range(1, KH):
        xi = conv_1xk(W_stack[i], b_stack[i])[:, :, i:, :]
        n = xi.shape[2]
        y = y.at[:, :, :n, :].add(xi)
    return y


if __name__ == "__main__":
    B, C_in, C_out, H, W = 2, 4, 4, 16, 16
    KH, KW = 3, 3                                  # kernel=(3, 3)

    key = jax.random.PRNGKey(0)
    kx, kwt, kb = jax.random.split(key, 3)
    bound = 1.0 / math.sqrt(C_in * 1 * KW)         # nn.Conv2d default init scale
    x = jax.random.normal(kx, (B, C_in, H, W), dtype=jnp.float32)
    W_stack = jax.random.uniform(kwt, (KH, C_out, C_in, KW), dtype=jnp.float32,
                                 minval=-bound, maxval=bound)
    b_stack = jax.random.uniform(kb, (KH, C_out), dtype=jnp.float32,
                                 minval=-bound, maxval=bound)

    y = jax.block_until_ready(causal_conv2d(x, W_stack, b_stack))
    y_ref = jax.block_until_ready(_reference(x, W_stack, b_stack))

    assert y.shape == (B, C_out, H, W - KW + 1), y.shape
    assert jnp.allclose(y, y_ref, atol=1e-4, rtol=1e-4), float(jnp.max(jnp.abs(y - y_ref)))
    print("KERNEL_OK")
</pallas_src>

<mosaic_0001>
module attributes {stable_mosaic.version = 11 : i64} {
  func.func @_causal_conv2d_kernel(%arg0: i32, %arg1: memref<1x4x384xf32, #tpu.memory_space<vmem>>, %arg2: memref<4x39xf32, #tpu.memory_space<vmem>>, %arg3: memref<1x4x256xf32, #tpu.memory_space<vmem>>, %arg4: memref<39x256xf32, #tpu.memory_space<vmem>>) attributes {dimension_semantics = [#tpu.dimension_semantics<parallel>], iteration_bounds = array<i64: 2>, scalar_prefetch = 0 : i64, scratch_operands = 1 : i64, tpu.core_type = #tpu.core_type<tc>, window_params = [{transform_indices = @transform_0, window_bounds = array<i64: 1, 4, 384>}, {pipeline_mode = #tpu.pipeline_mode<synchronous>, transform_indices = @transform_1, window_bounds = array<i64: 4, 39>}, {transform_indices = @transform_2, window_bounds = array<i64: 1, 4, 256>}]} {
    %0 = tpu.iota {dimensions = array<i32: 1>} : vector<3x256xi32>
    %1 = tpu.iota {dimensions = array<i32: 0>} : vector<3x256xi32>
    %c16_i32 = arith.constant 16 : i32
    %2 = vector.broadcast %c16_i32 : i32 to vector<3x256xi32>
    %3 = arith.muli %1, %2 : vector<3x256xi32>
    %c256_i32 = arith.constant 256 : i32
    %4 = vector.broadcast %c256_i32 : i32 to vector<3x256xi32>
    %5 = arith.subi %4, %3 : vector<3x256xi32>
    %6 = arith.cmpi slt, %0, %5 : vector<3x256xi32>
    %7 = arith.extui %6 : vector<3x256xi1> to vector<3x256xi32>
    %8 = arith.sitofp %7 : vector<3x256xi32> to vector<3x256xf32>
    %c36 = arith.constant 36 : index
    %c0 = arith.constant 0 : index
    %9 = vector.load %arg4[%c36, %c0] : memref<39x256xf32, #tpu.memory_space<vmem>>, vector<3x256xf32>
    tpu.vector_store %arg4[%c36, %c0], %8 {strides = array<i32>} : memref<39x256xf32, #tpu.memory_space<vmem>>, vector<3x256xf32>,
    %c0_0 = arith.constant 0 : index
    %c0_1 = arith.constant 0 : index
    %c0_2 = arith.constant 0 : index
    %10 = vector.load %arg1[%c0_0, %c0_1, %c0_2] : memref<1x4x384xf32, #tpu.memory_space<vmem>>, vector<1x4x256xf32>
    %11 = vector.shape_cast %10 : vector<1x4x256xf32> to vector<4x256xf32>
    %c0_3 = arith.constant 0 : index
    %c0_4 = arith.constant 0 : index
    %12 = vector.load %arg4[%c0_3, %c0_4] : memref<39x256xf32, #tpu.memory_space<vmem>>, vector<4x256xf32>
    tpu.vector_store %arg4[%c0_3, %c0_4], %11 {strides = array<i32>} : memref<39x256xf32, #tpu.memory_space<vmem>>, vector<4x256xf32>,
    %c0_5 = arith.constant 0 : index
    %c0_6 = arith.constant 0 : index
    %c1 = arith.constant 1 : index
    %13 = vector.load %arg1[%c0_5, %c0_6, %c1] : memref<1x4x384xf32, #tpu.memory_space<vmem>>, vector<1x4x256xf32>
    %14 = vector.shape_cast %13 : vector<1x4x256xf32> to vector<4x256xf32>
    %c4 = arith.constant 4 : index
    %c0_7 = arith.constant 0 : index
    %15 = vector.load %arg4[%c4, %c0_7] : memref<39x256xf32, #tpu.memory_space<vmem>>, vector<4x256xf32>
    tpu.vector_store %arg4[%c4, %c0_7], %14 {strides = array<i32>} : memref<39x256xf32, #tpu.memory_space<vmem>>, vector<4x256xf32>,
    %c0_8 = arith.constant 0 : index
    %c0_9 = arith.constant 0 : index
    %c2 = arith.constant 2 : index
    %16 = vector.load %arg1[%c0_8, %c0_9, %c2] : memref<1x4x384xf32, #tpu.memory_space<vmem>>, vector<1x4x256xf32>
    %17 = vector.shape_cast %16 : vector<1x4x256xf32> to vector<4x256xf32>
    %c8 = arith.constant 8 : index
    %c0_10 = arith.constant 0 : index
    %18 = vector.load %arg4[%c8, %c0_10] : memref<39x256xf32, #tpu.memory_space<vmem>>, vector<4x256xf32>
    tpu.vector_store %arg4[%c8, %c0_10], %17 {strides = array<i32>} : memref<39x256xf32, #tpu.memory_space<vmem>>, vector<4x256xf32>,
    %c0_11 = arith.constant 0 : index
    %c0_12 = arith.constant 0 : index
    %c16 = arith.constant 16 : index
    %19 = vector.load %arg1[%c0_11, %c0_12, %c16] : memref<1x4x384xf32, #tpu.memory_space<vmem>>, vector<1x4x256xf32>
    %20 = vector.shape_cast %19 : vector<1x4x256xf32> to vector<4x256xf32>
    %c12 = arith.constant 12 : index
    %c0_13 = arith.constant 0 : index
    %21 = vector.load %arg4[%c12, %c0_13] : memref<39x256xf32, #tpu.memory_space<vmem>>, vector<4x256xf32>
    tpu.vector_store %arg4[%c12, %c0_13], %20 {strides = array<i32>} : memref<39x256xf32, #tpu.memory_space<vmem>>, vector<4x256xf32>,
    %c0_14 = arith.constant 0 : index
    %c0_15 = arith.constant 0 : index
    %c17 = arith.constant 17 : index
    %22 = vector.load %arg1[%c0_14, %c0_15, %c17] : memref<1x4x384xf32, #tpu.memory_space<vmem>>, vector<1x4x256xf32>
    %23 = vector.shape_cast %22 : vector<1x4x256xf32> to vector<4x256xf32>
    %c16_16 = arith.constant 16 : index
    %c0_17 = arith.constant 0 : index
    %24 = vector.load %arg4[%c16_16, %c0_17] : memref<39x256xf32, #tpu.memory_space<vmem>>, vector<4x256xf32>
    tpu.vector_store %arg4[%c16_16, %c0_17], %23 {strides = array<i32>} : memref<39x256xf32, #tpu.memory_space<vmem>>, vector<4x256xf32>,
    %c0_18 = arith.constant 0 : index
    %c0_19 = arith.constant 0 : index
    %c18 = arith.constant 18 : index
    %25 = vector.load %arg1[%c0_18, %c0_19, %c18] : memref<1x4x384xf32, #tpu.memory_space<vmem>>, vector<1x4x256xf32>
    %26 = vector.shape_cast %25 : vector<1x4x256xf32> to vector<4x256xf32>
    %c20 = arith.constant 20 : index
    %c0_20 = arith.constant 0 : index
    %27 = vector.load %arg4[%c20, %c0_20] : memref<39x256xf32, #tpu.memory_space<vmem>>, vector<4x256xf32>
    tpu.vector_store %arg4[%c20, %c0_20], %26 {strides = array<i32>} : memref<39x256xf32, #tpu.memory_space<vmem>>, vector<4x256xf32>,
    %c0_21 = arith.constant 0 : index
    %c0_22 = arith.constant 0 : index
    %c32 = arith.constant 32 : index
    %28 = vector.load %arg1[%c0_21, %c0_22, %c32] : memref<1x4x384xf32, #tpu.memory_space<vmem>>, vector<1x4x256xf32>
    %29 = vector.shape_cast %28 : vector<1x4x256xf32> to vector<4x256xf32>
    %c24 = arith.constant 24 : index
    %c0_23 = arith.constant 0 : index
    %30 = vector.load %arg4[%c24, %c0_23] : memref<39x256xf32, #tpu.memory_space<vmem>>, vector<4x256xf32>
    tpu.vector_store %arg4[%c24, %c0_23], %29 {strides = array<i32>} : memref<39x256xf32, #tpu.memory_space<vmem>>, vector<4x256xf32>,
    %c0_24 = arith.constant 0 : index
    %c0_25 = arith.constant 0 : index
    %c33 = arith.constant 33 : index
    %31 = vector.load %arg1[%c0_24, %c0_25, %c33] : memref<1x4x384xf32, #tpu.memory_space<vmem>>, vector<1x4x256xf32>
    %32 = vector.shape_cast %31 : vector<1x4x256xf32> to vector<4x256xf32>
    %c28 = arith.constant 28 : index
    %c0_26 = arith.constant 0 : index
    %33 = vector.load %arg4[%c28, %c0_26] : memref<39x256xf32, #tpu.memory_space<vmem>>, vector<4x256xf32>
    tpu.vector_store %arg4[%c28, %c0_26], %32 {strides = array<i32>} : memref<39x256xf32, #tpu.memory_space<vmem>>, vector<4x256xf32>,
    %c0_27 = arith.constant 0 : index
    %c0_28 = arith.constant 0 : index
    %c34 = arith.constant 34 : index
    %34 = vector.load %arg1[%c0_27, %c0_28, %c34] : memref<1x4x384xf32, #tpu.memory_space<vmem>>, vector<1x4x256xf32>
    %35 = vector.shape_cast %34 : vector<1x4x256xf32> to vector<4x256xf32>
    %c32_29 = arith.constant 32 : index
    %c0_30 = arith.constant 0 : index
    %36 = vector.load %arg4[%c32_29, %c0_30] : memref<39x256xf32, #tpu.memory_space<vmem>>, vector<4x256xf32>
    tpu.vector_store %arg4[%c32_29, %c0_30], %35 {strides = array<i32>} : memref<39x256xf32, #tpu.memory_space<vmem>>, vector<4x256xf32>,
    %c0_31 = arith.constant 0 : index
    %c0_32 = arith.constant 0 : index
    %37 = vector.load %arg2[%c0_31, %c0_32] : memref<4x39xf32, #tpu.memory_space<vmem>>, vector<4x39xf32>
    %c0_33 = arith.constant 0 : index
    %c0_34 = arith.constant 0 : index
    %38 = vector.load %arg4[%c0_33, %c0_34] : memref<39x256xf32, #tpu.memory_space<vmem>>, vector<39x256xf32>
    %cst = arith.constant dense<0.000000e+00> : vector<4x256xf32>
    %39 = tpu.matmul %37, %38, %cst {dimension_numbers = #tpu.dot_dimension_numbers<[1], [0], [0], [1], [0, 0, 1, 1], [], []>} : vector<4x39xf32>, vector<39x256xf32>, vector<4x256xf32> -> vector<4x256xf32>
    %c0_35 = arith.constant 0 : index
    %c0_36 = arith.constant 0 : index
    %c0_37 = arith.constant 0 : index
    %40 = vector.load %arg3[%c0_35, %c0_36, %c0_37] : memref<1x4x256xf32, #tpu.memory_space<vmem>>, vector<1x4x256xf32>
    %41 = vector.shape_cast %40 : vector<1x4x256xf32> to vector<4x256xf32>
    %42 = vector.shape_cast %39 : vector<4x256xf32> to vector<1x4x256xf32>
    tpu.vector_store %arg3[%c0_35, %c0_36, %c0_37], %42 {strides = array<i32>} : memref<1x4x256xf32, #tpu.memory_space<vmem>>, vector<1x4x256xf32>,
    return
  }
  func.func @transform_0(%arg0: i32) -> (i32, i32, i32) {
    %c0_i32 = arith.constant 0 : i32
    %c0_i32_0 = arith.constant 0 : i32
    %c0_i32_1 = arith.constant 0 : i32
    return %arg0, %c0_i32, %c0_i32_0 : i32, i32, i32
  }
  func.func @transform_1(%arg0: i32) -> (i32, i32) {
    %c0_i32 = arith.constant 0 : i32
    %c0_i32_0 = arith.constant 0 : i32
    %c0_i32_1 = arith.constant 0 : i32
    return %c0_i32, %c0_i32_0 : i32, i32
  }
  func.func @transform_2(%arg0: i32) -> (i32, i32, i32) {
    %c0_i32 = arith.constant 0 : i32
    %c0_i32_0 = arith.constant 0 : i32
    %c0_i32_1 = arith.constant 0 : i32
    return %arg0, %c0_i32, %c0_i32_0 : i32, i32, i32
  }
}

</mosaic_0001>

<llo_original>
// kernel: causal_conv2d.1
$region0: #{causal_conv2d.1}
  #allocation0 [shape = 'u32[]', space=smem, size = 0x4, offset = 0x4, fixed_abs, tag = 'smem constant byte address 0x4 - core index']
  #allocation1 [shape = 'u32[144,128]{1,0:T(1,128)}', space=vmem, size = 0x12000, scoped, tag = 'internal scratch']
  #allocation2 [shape = 'f32[39,256]{1,0:T(8,128)}', space=vmem, size = 0xa000, scoped, tag = 'scratch operand']
  %s0 = inlined_call_operand.vmem [shape: f32[2,4,384], index: 0, kind: input, shape index: {}]
  %s1 = inlined_call_operand.vmem [shape: f32[4,39], index: 1, kind: input, shape index: {}]
  %s2 = inlined_call_operand.vmem [shape: f32[2,4,256], index: 2, kind: output, shape index: {}]
  %s3 = sld [smem:[#allocation0]]
  $region41: #{causal_conv2d.1} parent=0
    _
  %s5 = ssub.s32 1, %s3
  %s6 = scalar_select 0, %s5, %s3
  loop: start=0, step=1, limit=4
  $region2: #{causal_conv2d.1} parent=0 // loop_pre_header
    _
  $region3: #{causal_conv2d.1} parent=0 // loop_header
    %s8 = sphi 0, %s12
    %p9 = scmp.ge.s32.totalorder %s8, 4
    %s18 = sphi 0, %s20
    %s21 = sphi 0, %s18
    %s22 = sphi 0, %s21
    %s38 = sphi 0, %s22
    %s42 = sphi 0, %s42
    %s44 = sphi 0, %s42
    %s45 = sphi 0, %s44
    %s59 = sphi 0, %s45
    %s65 = sphi 0, %s67
    %s68 = sphi 0, %s65
    %s69 = sphi 0, %s68
    %s85 = sphi 0, %s69
  $region4: #{causal_conv2d.1} parent=0 // loop_header_branch
    %11 = sbr.rel (%p9) target = $region8
  $region5: #{causal_conv2d.1} parent=0 // loop_body
    %s13 = ssub.s32 %s8, 1
    %s14 = ssub.s32 %s8, 2
    %s15 = sadd.s32 %s8, 1
    %s16 = ssub.s32 %s8, %s15
    %p17 = scmp.eq.s32.totalorder %s16, 0
    %s19 = sadd.s32 %s18, 1
    %s20 = scalar_select %p17, %s18, %s19
    %p23 = pneg %p17
    %p24 = scmp.eq.s32.totalorder %s8, 1
    %p25 = por %p23, %p24
    %p26 = scmp.ne.s32.totalorder %s18, %s21
    %p27 = scmp.eq.s32.totalorder %s8, 0
    %p28 = por %p26, %p27
    %p29 = scmp.ne.s32.totalorder %s18, %s21
    %p30 = scmp.eq.s32.totalorder %s13, 1
    %p31 = por %p29, %p30
    %p32 = scmp.ne.s32.totalorder %s21, %s22
    %p33 = scmp.eq.s32.totalorder %s13, 0
    %p34 = por %p32, %p33
    %p35 = scmp.ne.s32.totalorder %s21, %s22
    %p36 = scmp.eq.s32.totalorder %s14, 1
    %p37 = por %p35, %p36
    %p39 = scmp.ne.s32.totalorder %s22, %s38
    %p40 = scmp.eq.s32.totalorder %s14, 0
    %p41 = por %p39, %p40
    %s43 = sadd.s32 %s42, 1
    %p46 = scmp.eq.s32.totalorder %s8, 1
    %p47 = scmp.ne.s32.totalorder %s42, %s44
    %p48 = scmp.eq.s32.totalorder %s8, 0
    %p49 = por %p47, %p48
    %p50 = scmp.ne.s32.totalorder %s42, %s44
    %p51 = scmp.eq.s32.totalorder %s13, 1
    %p52 = por %p50, %p51
    %p53 = scmp.ne.s32.totalorder %s44, %s45
    %p54 = scmp.eq.s32.totalorder %s13, 0
    %p55 = por %p53, %p54
    %p56 = scmp.ne.s32.totalorder %s44, %s45
    %p57 = scmp.eq.s32.totalorder %s14, 1
    %p58 = por %p56, %p57
    %p60 = scmp.ne.s32.totalorder %s45, %s59
    %p61 = scmp.eq.s32.totalorder %s14, 0
    %p62 = por %p60, %p61
    %s63 = ssub.s32 %s8, %s15
    %p64 = scmp.eq.s32.totalorder %s63, 0
    %s66 = sadd.s32 %s65, 1
    %s67 = scalar_select %p64, %s65, %s66
    %p70 = pneg %p64
    %p71 = scmp.eq.s32.totalorder %s8, 1
    %p72 = por %p70, %p71
    %p73 = scmp.ne.s32.totalorder %s65, %s68
    %p74 = scmp.eq.s32.totalorder %s8, 0
    %p75 = por %p73, %p74
    %p76 = scmp.ne.s32.totalorder %s65, %s68
    %p77 = scmp.eq.s32.totalorder %s13, 1
    %p78 = por %p76, %p77
    %p79 = scmp.ne.s32.totalorder %s68, %s69
    %p80 = scmp.eq.s32.totalorder %s13, 0
    %p81 = por %p79, %p80
    %p82 = scmp.ne.s32.totalorder %s68, %s69
    %p83 = scmp.eq.s32.totalorder %s14, 1
    %p84 = por %p82, %p83
    %p86 = scmp.ne.s32.totalorder %s69, %s85
    %p87 = scmp.eq.s32.totalorder %s14, 0
    %p88 = por %p86, %p87
    %p89 = scmp.le.s32.totalorder 1, %s8
    %p90 = scmp.lt.s32.totalorder %s8, 3
    %p91 = pnand %p89, %p90
    %p92 = pneg %p91
    // Predicated region
    $region9: #{causal_conv2d.1} parent=5 // pred_check
      _
    $region10: #{causal_conv2d.1} parent=5 // pred_check_branch
      %94 = sbr.rel (%p91) target = $region12
    $region11: #{causal_conv2d.1} parent=5 // pred_region
      %s95 = ssub.s32 %s8, 1
      // Predicated region
      $region13: #{causal_conv2d.1} parent=11 // pred_check
        %p96 = pneg %p55
      $region14: #{causal_conv2d.1} parent=11 // pred_check_branch
        %98 = sbr.rel (%p96) target = $region16
      $region15: #{causal_conv2d.1} parent=11 // pred_region
        _
      $region16: #{causal_conv2d.1} parent=11 // pred_fallthru
        _
    $region12: #{causal_conv2d.1} parent=5 // pred_fallthru
      _
    %p99 = scmp.lt.s32.totalorder %s8, 2
    // Predicated region
    $region17: #{causal_conv2d.1} parent=5 // pred_check
      %p100 = pneg %p99
    $region18: #{causal_conv2d.1} parent=5 // pred_check_branch
      %102 = sbr.rel (%p100) target = $region20
    $region19: #{causal_conv2d.1} parent=5 // pred_region
      // Predicated region
      $region21: #{causal_conv2d.1} parent=19 // pred_check
        %p103 = pneg %p28
      $region22: #{causal_conv2d.1} parent=19 // pred_check_branch
        %105 = sbr.rel (%p103) target = $region24
      $region23: #{causal_conv2d.1} parent=19 // pred_region
        %p106 = scmp.lt.s32.totalorder %s8, 1
        %s107 = scalar_select %p106, %s8, 1
        %s108 = smul.addr %s107, 3
        %s109 = smul.addr %s108, 4
        %s110 = scalar_lea.vmem %s0, %s109
      $region24: #{causal_conv2d.1} parent=19 // pred_fallthru
        _
    $region20: #{causal_conv2d.1} parent=5 // pred_fallthru
      _
    %p111 = scmp.le.s32.totalorder 1, %s8
    %p112 = scmp.lt.s32.totalorder %s8, 3
    %p113 = pnand %p111, %p112
    %p114 = pneg %p113
    // Predicated region
    $region25: #{causal_conv2d.1} parent=5 // pred_check
      _
    $region26: #{causal_conv2d.1} parent=5 // pred_check_branch
      %116 = sbr.rel (%p113) target = $region28
    $region27: #{causal_conv2d.1} parent=5 // pred_region
      %s117 = ssub.s32 %s8, 1
      %p118 = scmp.lt.s32.totalorder %s13, 1
      %s119 = scalar_select %p118, %s13, 1
      %s120 = smul.addr %s119, 3
      %s121 = smul.addr %s120, 4
      %s122 = scalar_lea.vmem %s0, %s121
      %p123 = pneg %p34
      %p124 = pneg %p31
      %p125 = pneg %p55
      %p126 = pneg %p52
      %p127 = pneg %p81
      %p128 = pneg %p78
      %p129 = scmp.lt.s32.totalorder %s13, 1
      %s130 = scalar_select %p129, %s13, 1
      %s131 = smul.addr %s130, 2
      %s132 = smul.addr %s131, 4
      %s133 = scalar_lea.vmem %s2, %s132
      %p134 = scmp.lt.s32.totalorder %s13, 1
      %s135 = scalar_select %p134, %s13, 1
      %s136 = smul.addr %s135, 3
      %s137 = smul.addr %s136, 4
      %s138 = scalar_lea.vmem %s0, %s137
      %p139 = scmp.lt.s32.totalorder %s13, 1
      %s140 = scalar_select %p139, %s13, 1
      %s141 = smul.addr %s140, 2
      %s142 = smul.addr %s141, 4
      %s143 = scalar_lea.vmem %s2, %s142
      %v144 = vlaneseq
      %v145 = vand.u32 %v144, 127
      %v146 = vadd.s32 %v145, 128
      %v147 = vlaneseq
      %v148 = vshrl.u32 %v147, 7
      %v149 = vmul.u32 %v148, 16
      %v150 = vsub.s32 256, %v149
      %vm151 = vcmp.lt.s32.totalorder %v145, %v150
      %vm152 = vcmp.lt.s32.totalorder %v146, %v150
      %v153 = vsel %vm151, 1, 0
      %v154 = vsel %vm152, 1, 0
      %v155 = vcvt.s32.f32 %v153
      %v156 = vcvt.s32.f32 %v154
      %v159 = vrot.slane %v155, 4
      %v160 = vrot.slane %v156, 4
      %163 = vst [vmem:[#allocation2 + $0x40] sm:$0x70] %v159
      %164 = vst [vmem:[#allocation2 + $0x48] sm:$0x70] %v160
      %v165 = vld [vmem:[%s138] sm:$0xff]
      %v167 = vcombine.high %v165, %v165
      %169 = vst [vmem:[#allocation2] sm:$0xf] %v165
      %170 = vst [vmem:[#allocation2 + $0x8] sm:$0xf] %v167
      %v171 = vld [vmem:[%s138] sm:$0xff]
      %v172 = vld [vmem:[%s138 + $0x8] sm:$0xf]
      %v175 = vcombine.low %v171, %v171
      %v176 = vcombine.low %v172, %v172
      %177 = vrot.lane.b32.xlu0 %v175, 127
      %v178 = vpop.permute.xlu0 %177
      %179 = vrot.lane.b32.xlu0 %v171, 127
      %v180 = vpop.permute.xlu0 %179
      %181 = vrot.lane.b32.xlu0 %v176, 127
      %v182 = vpop.permute.xlu0 %181
      %vm183 = vcmask 1039360
      %v184 = vsel %vm183, %v178, %v180
      %v185 = vsel %vm183, %v180, %v182
      %188 = vst [vmem:[#allocation2] sm:$0xf0] %v184
      %189 = vst [vmem:[#allocation2 + $0x8] sm:$0xf0] %v185
      %v190 = vld [vmem:[%s138] sm:$0xff]
      %v191 = vld [vmem:[%s138 + $0x8] sm:$0xf]
      %v194 = vcombine.high %v190, %v190
      %195 = vrot.lane.b32.xlu0 %v190, 126
      %v196 = vpop.permute.xlu0 %195
      %197 = vrot.lane.b32.xlu0 %v194, 126
      %v198 = vpop.permute.xlu0 %197
      %199 = vrot.lane.b32.xlu0 %v191, 126
      %v200 = vpop.permute.xlu0 %199
      %vm201 = vcmask 1031168
      %v202 = vsel %vm201, %v196, %v198
      %v203 = vsel %vm201, %v198, %v200
      %206 = vst [vmem:[#allocation2 + $0x10] sm:$0xf] %v202
      %207 = vst [vmem:[#allocation2 + $0x18] sm:$0xf] %v203
      %v208 = vld [vmem:[%s138] sm:$0xff]
      %v209 = vld [vmem:[%s138 + $0x8] sm:$0xf]
      %v212 = vcombine.low %v208, %v208
      %v213 = vcombine.low %v209, %v209
      %214 = vrot.lane.b32.xlu0 %v212, 112
      %v215 = vpop.permute.xlu0 %214
      %216 = vrot.lane.b32.xlu0 %v208, 112
      %v217 = vpop.permute.xlu0 %216
      %218 = vrot.lane.b32.xlu0 %v213, 112
      %v219 = vpop.permute.xlu0 %218
      %vm220 = vcmask 916480
      %v221 = vsel %vm220, %v215, %v217
      %v222 = vsel %vm220, %v217, %v219
      %225 = vst [vmem:[#allocation2 + $0x10] sm:$0xf0] %v221
      %226 = vst [vmem:[#allocation2 + $0x18] sm:$0xf0] %v222
      %v227 = vld [vmem:[%s138] sm:$0xff]
      %v228 = vld [vmem:[%s138 + $0x8] sm:$0xf]
      %v231 = vcombine.high %v227, %v227
      %232 = vrot.lane.b32.xlu0 %v227, 111
      %v233 = vpop.permute.xlu0 %232
      %234 = vrot.lane.b32.xlu0 %v231, 111
      %v235 = vpop.permute.xlu0 %234
      %236 = vrot.lane.b32.xlu0 %v228, 111
      %v237 = vpop.permute.xlu0 %236
      %vm238 = vcmask 908288
      %v239 = vsel %vm238, %v233, %v235
      %v240 = vsel %vm238, %v235, %v237
      %243 = vst [vmem:[#allocation2 + $0x20] sm:$0xf] %v239
      %244 = vst [vmem:[#allocation2 + $0x28] sm:$0xf] %v240
      %v245 = vld [vmem:[%s138] sm:$0xff]
      %v246 = vld [vmem:[%s138 + $0x8] sm:$0xf]
      %v249 = vcombine.low %v245, %v245
      %v250 = vcombine.low %v246, %v246
      %251 = vrot.lane.b32.xlu0 %v249, 110
      %v252 = vpop.permute.xlu0 %251
      %253 = vrot.lane.b32.xlu0 %v245, 110
      %v254 = vpop.permute.xlu0 %253
      %255 = vrot.lane.b32.xlu0 %v250, 110
      %v256 = vpop.permute.xlu0 %255
      %vm257 = vcmask 900096
      %v258 = vsel %vm257, %v252, %v254
      %v259 = vsel %vm257, %v254, %v256
      %262 = vst [vmem:[#allocation2 + $0x20] sm:$0xf0] %v258
      %263 = vst [vmem:[#allocation2 + $0x28] sm:$0xf0] %v259
      %v264 = vld [vmem:[%s138] sm:$0xff]
      %v265 = vld [vmem:[%s138 + $0x8] sm:$0xf]
      %v268 = vcombine.high %v264, %v264
      %269 = vrot.lane.b32.xlu0 %v264, 96
      %v270 = vpop.permute.xlu0 %269
      %271 = vrot.lane.b32.xlu0 %v268, 96
      %v272 = vpop.permute.xlu0 %271
      %273 = vrot.lane.b32.xlu0 %v265, 96
      %v274 = vpop.permute.xlu0 %273
      %vm275 = vcmask 785408
      %v276 = vsel %vm275, %v270, %v272
      %v277 = vsel %vm275, %v272, %v274
      %280 = vst [vmem:[#allocation2 + $0x30] sm:$0xf] %v276
      %281 = vst [vmem:[#allocation2 + $0x38] sm:$0xf] %v277
      %v282 = vld [vmem:[%s138] sm:$0xff]
      %v283 = vld [vmem:[%s138 + $0x8] sm:$0xf]
      %v286 = vcombine.low %v282, %v282
      %v287 = vcombine.low %v283, %v283
      %288 = vrot.lane.b32.xlu0 %v286, 95
      %v289 = vpop.permute.xlu0 %288
      %290 = vrot.lane.b32.xlu0 %v282, 95
      %v291 = vpop.permute.xlu0 %290
      %292 = vrot.lane.b32.xlu0 %v287, 95
      %v293 = vpop.permute.xlu0 %292
      %vm294 = vcmask 777216
      %v295 = vsel %vm294, %v289, %v291
      %v296 = vsel %vm294, %v291, %v293
      %299 = vst [vmem:[#allocation2 + $0x30] sm:$0xf0] %v295
      %300 = vst [vmem:[#allocation2 + $0x38] sm:$0xf0] %v296
      %v301 = vld [vmem:[%s138] sm:$0xff]
      %v302 = vld [vmem:[%s138 + $0x8] sm:$0xf]
      %v305 = vcombine.high %v301, %v301
      %306 = vrot.lane.b32.xlu0 %v301, 94
      %v307 = vpop.permute.xlu0 %306
      %308 = vrot.lane.b32.xlu0 %v305, 94
      %v309 = vpop.permute.xlu0 %308
      %310 = vrot.lane.b32.xlu0 %v302, 94
      %v311 = vpop.permute.xlu0 %310
      %vm312 = vcmask 769024
      %v313 = vsel %vm312, %v307, %v309
      %v314 = vsel %vm312, %v309, %v311
      %317 = vst [vmem:[#allocation2 + $0x40] sm:$0xf] %v313
      %318 = vst [vmem:[#allocation2 + $0x48] sm:$0xf] %v314
      %v319 = vld [vmem:[%s1] sm:$0xf]
      %v320 = vld [vmem:[#allocation2] sm:$0xff]
      %v321 = vld [vmem:[#allocation2 + $0x8] sm:$0xff]
      %v322 = vld [vmem:[#allocation2 + $0x10] sm:$0xff]
      %v323 = vld [vmem:[#allocation2 + $0x18] sm:$0xff]
      %v324 = vld [vmem:[#allocation2 + $0x20] sm:$0xff]
      %v325 = vld [vmem:[#allocation2 + $0x28] sm:$0xff]
      %v326 = vld [vmem:[#allocation2 + $0x30] sm:$0xff]
      %v327 = vld [vmem:[#allocation2 + $0x38] sm:$0xff]
      %v328 = vld [vmem:[#allocation2 + $0x40] sm:$0x7f]
      %v329 = vld [vmem:[#allocation2 + $0x48] sm:$0x7f]
      %vm330 = vcmask 318464
      %v332 = vsel %vm330, %v319, 0
      %vm334 = vcmask 1046528
      %v336 = vsel %vm334, %v328, 0
      %v339 = vsel %vm334, %v329, 0
      %341 = vmatprep.subr.mxu0 %v321
      %342 = vmatpush1.msra.mxu0 %v320
      %343 = vmatprep.subr.mxu0 %v323
      %344 = vmatpush1.msra.mxu0 %v322
      %345 = vmatprep.subr.mxu0 %v325
      %346 = vmatpush1.msra.mxu0 %v324
      %347 = vmatprep.subr.mxu0 %v327
      %348 = vmatpush1.msra.mxu0 %v326
      %349 = vmatprep.subr.mxu0 %v339
      %350 = vmatpush1.msra.mxu0 %v336
      %351 = vmatprep.subr.mxu0 0.0
      %352 = vmatpush1.msra.mxu0 0.0
      %353 = vmatprep.subr.mxu0 0.0
      %354 = vmatpush1.msra.mxu0 0.0
      %355 = vmatprep.subr.mxu0 0.0
      %356 = vmatpush1.msra.mxu0 0.0
      %357 = vmatprep.subr.mxu0 0.0
      %358 = vmatpush1.msra.mxu0 0.0
      %359 = vmatprep.subr.mxu0 0.0
      %360 = vmatpush1.msra.mxu0 0.0
      %361 = vmatprep.subr.mxu0 0.0
      %362 = vmatpush1.msra.mxu0 0.0
      %363 = vmatprep.subr.mxu0 0.0
      %364 = vmatpush1.msra.mxu0 0.0
      %365 = vmatprep.subr.mxu0 0.0
      %366 = vmatpush1.msra.mxu0 0.0
      %367 = vmatprep.subr.mxu0 0.0
      %368 = vmatpush1.msra.mxu0 0.0
      %369 = vmatprep.subr.mxu0 0.0
      %370 = vmatpush1.msra.mxu0 0.0
      %371 = vmatprep.subr.mxu0 0.0
      %372 = vmatpush1.msra.mxu0 0.0
      %373 = vmatprep.subr.mxu0 0.0
      %374 = vmatpush1.msra.mxu0 0.0
      %375 = vmatprep.subr.mxu0 0.0
      %376 = vmatpush1.msra.mxu0 0.0
      %377 = vmatprep.subr.mxu0 0.0
      %378 = vmatpush1.msra.mxu0 0.0
      %379 = vmatprep.subr.mxu0 0.0
      %380 = vmatpush1.msra.mxu0 0.0
      %381 = vmatprep.subr.mxu0 0.0
      %382 = vmatpush1.msra.mxu0 0.0
      %383 = vmatprep.subr.mxu0 0.0
      %384 = vmatpush1.msra.mxu0 0.0
      %385 = vmatprep.subr.mxu0 0.0
      %386 = vmatpush1.msra.mxu0 0.0
      %387 = vmatprep.subr.mxu0 0.0
      %388 = vmatpush1.msra.mxu0 0.0
      %389 = vmatprep.subr.mxu0 0.0
      %390 = vmatpush1.msra.mxu0 0.0
      %391 = vmatprep.subr.mxu0 0.0
      %392 = vmatpush1.msra.mxu0 0.0
      %393 = vmatprep.subr.mxu0 0.0
      %394 = vmatpush1.msra.mxu0 0.0
      %395 = vmatprep.subr.mxu0 0.0
      %396 = vmatpush1.msra.mxu0 0.0
      %397 = vmatprep.subr.mxu0 0.0
      %398 = vmatpush1.msra.mxu0 0.0
      %399 = vmatprep.subr.mxu0 0.0
      %400 = vmatpush1.msra.mxu0 0.0
      %401 = vmatprep.subr.mxu0 0.0
      %402 = vmatpush1.msra.mxu0 0.0
      %403 = vmatprep.subr.mxu0 0.0
      %404 = vmatpush1.msra.mxu0 0.0
      %405 = vmatprep.mubr.f32.mxu0 0.0
      %406 = vmatmul.mubr.f32.gmra.mrb[0].mxu0 %v332
      %v407 = vpop.f32.mrb[0].mxu0
      %v408 = vadd.f32 0.0, %v407
      %v409 = vpop.f32.mrb[0].mxu0
      %v410 = vadd.f32 0.0, %v409
      %411 = vdwg.mxu0
      %v414 = vcombine.low %v408, %v410
      %416 = vst [vmem:[%s143] sm:$0xff] %v414
      %p417 = scmp.lt.s32.totalorder %s13, 1
      %s418 = scalar_select %p417, %s13, 1
      %s419 = smul.addr %s418, 2
      %s420 = smul.addr %s419, 4
      %s421 = scalar_lea.vmem %s2, %s420
      // Predicated region
      $region29: #{causal_conv2d.1} parent=27 // pred_check
        %p422 = pneg %p78
      $region30: #{causal_conv2d.1} parent=27 // pred_check_branch
        %424 = sbr.rel (%p422) target = $region32
      $region31: #{causal_conv2d.1} parent=27 // pred_region
        _
      $region32: #{causal_conv2d.1} parent=27 // pred_fallthru
        _
    $region28: #{causal_conv2d.1} parent=5 // pred_fallthru
      _
    %p425 = scmp.le.s32.totalorder 2, %s8
    // Predicated region
    $region33: #{causal_conv2d.1} parent=5 // pred_check
      %p426 = pneg %p425
    $region34: #{causal_conv2d.1} parent=5 // pred_check_branch
      %428 = sbr.rel (%p426) target = $region36
    $region35: #{causal_conv2d.1} parent=5 // pred_region
      %s429 = ssub.s32 %s8, 2
      // Predicated region
      $region37: #{causal_conv2d.1} parent=35 // pred_check
        %p430 = pneg %p84
      $region38: #{causal_conv2d.1} parent=35 // pred_check_branch
        %432 = sbr.rel (%p430) target = $region40
      $region39: #{causal_conv2d.1} parent=35 // pred_region
        %p433 = scmp.lt.s32.totalorder %s14, 1
        %s434 = scalar_select %p433, %s14, 1
        %s435 = smul.addr %s434, 2
        %s436 = smul.addr %s435, 4
        %s437 = scalar_lea.vmem %s2, %s436
      $region40: #{causal_conv2d.1} parent=35 // pred_fallthru
        _
    $region36: #{causal_conv2d.1} parent=5 // pred_fallthru
      _
  $region6: #{causal_conv2d.1} parent=0 // loop_footer
    %s12 = sadd.s32 1, %s8
  $region7: #{causal_conv2d.1} parent=0 // loop_footer_branch
    %7 = sbr.rel target = $region3
  $region8: #{causal_conv2d.1} parent=0 // loop_exit
    _

</llo_original>
